<compile_context>
chip_gen: v5e
topology: v5e:2x2
jax: 0.10.0
libtpu: 0.0.40
codegen_flags: <defaults>
</compile_context>

<pallas_src>
import functools

import jax
import jax.numpy as jnp
from jax.experimental import pallas as pl
from jax.experimental.pallas import tpu as pltpu


# ----------------------------------------------------------------------------
# Fused scoring kernel: 4 x (B,D)@(D,tn) bf16 MXU dots -> f32, + bias, sigmoid.
# ----------------------------------------------------------------------------
def _scoring_kernel(t_ref, e_ref, b_ref, y_ref):
    # t_ref: (4, B, D)  bf16, VMEM-resident across the whole grid
    # e_ref: (4, D, tn) bf16, pre-normalized entity tile (N on lanes)
    # b_ref: (4, 1, tn) f32 bias tile
    # y_ref: (4, B, tn) f32 output tile
    for c in range(4):
        s = jnp.dot(t_ref[c], e_ref[c], preferred_element_type=jnp.float32)
        y_ref[c] = jax.nn.sigmoid(s + b_ref[c])


def _choose_entity_tile(n_entities, dim, batch):
    """Entity rows per grid step, sized from a per-generation VMEM budget."""
    # bytes per entity row per (single) buffer: E tile (bf16) + bias (f32) + out (f32)
    row_bytes = 4 * dim * 2 + 4 * 4 + 4 * batch * 4
    try:
        vmem = pltpu.get_tpu_info().vmem_capacity_bytes
    except Exception:  # no TPU info at trace/prepare time -> conservative (v7x) budget
        vmem = 64 * 1024 * 1024
    # total double-buffered working set target (fits v7x 64 MiB/TC with headroom)
    budget = min(vmem // 2, 32 * 1024 * 1024)
    tn = budget // (2 * row_bytes)
    # keep >= ~8 grid steps on large N so v7x's two TCs both get work + pipeline depth
    tn = min(tn, pl.cdiv(n_entities, 8))
    # multiple of 128 -> lane-dense (unmasked) output stores; at least one full lane tile
    tn = max(128, (tn // 128) * 128)
    return int(tn)


def qubite_scores(t, e_norm_t, bias, *, tn):
    """t: (4,B,D) bf16; e_norm_t: (4,D,N_pad) bf16; bias: (4,1,N_pad) f32.

    Returns (4, B, N_pad) f32 sigmoid scores.
    """
    _, B, D = t.shape
    n_pad = e_norm_t.shape[2]
    assert n_pad % tn == 0  # guaranteed by prepare_params

    t_spec = pl.BlockSpec((4, B, D), lambda j: (0, 0, 0))        # resident in VMEM
    e_spec = pl.BlockSpec((4, D, tn), lambda j: (0, 0, j))       # streamed, N on lanes
    b_spec = pl.BlockSpec((4, 1, tn), lambda j: (0, 0, j))
    o_spec = pl.BlockSpec((4, B, tn), lambda j: (0, 0, j))

    return pl.pallas_call(
        _scoring_kernel,
        out_shape=jax.ShapeDtypeStruct((4, B, n_pad), jnp.float32),
        grid_spec=pltpu.PrefetchScalarGridSpec(
            num_scalar_prefetch=0,
            grid=(n_pad // tn,),
            in_specs=[t_spec, e_spec, b_spec],
            out_specs=o_spec,
        ),
        compiler_params=pltpu.CompilerParams(
            dimension_semantics=("parallel",),          # 2-TC sharding on v7x
            vmem_limit_bytes=48 * 1024 * 1024,           # >= 2x the <=32 MiB budget? no: budget<=32MiB total
        ),
    )(t, e_norm_t, bias)


# ----------------------------------------------------------------------------
# One-time parameter preparation (done at init, NOT per forward call):
#   pre-normalize E (eval-mode QubitNorm is batch independent), pre-transpose,
#   cast to bf16, pad N to a multiple of the chosen entity tile, stack biases.
# ----------------------------------------------------------------------------
def prepare_params(params, *, batch_hint=8):
    E = params["E"]                                     # (4, N, D) f32
    N, D = E.shape[1], E.shape[2]
    tn = _choose_entity_tile(N, D, batch_hint)
    n_pad = pl.cdiv(N, tn) * tn

    inv = jax.lax.rsqrt(jnp.sum(E * E, axis=0, keepdims=True))   # QubitNorm(E)
    e_norm_t = jnp.transpose(E * inv, (0, 2, 1)).astype(jnp.bfloat16)   # (4, D, N)
    bias = jnp.stack([params["b_a"], params["b_x"], params["b_y"], params["b_z"]])  # (4, N)
    if n_pad != N:
        pad = n_pad - N
        # padded columns are zero (normalized BEFORE padding, so no rsqrt(0) NaNs);
        # their scores are sliced off after the kernel.
        e_norm_t = jnp.pad(e_norm_t, ((0, 0), (0, 0), (0, pad)))
        bias = jnp.pad(bias, ((0, 0), (0, pad)))
    bias = bias.reshape(4, 1, n_pad)

    prepared = {
        "E": E,                      # raw table, for head-entity gathers
        "R": params["R"],
        "R_psi": params["R_psi"],
        "E_norm_T": e_norm_t,        # (4, D, N_pad) bf16, pre-normalized
        "bias": bias,                # (4, 1, N_pad) f32
    }
    return prepared, tn


# ----------------------------------------------------------------------------
# QubitE forward (forward_head_batch), eval mode.
# ----------------------------------------------------------------------------
@functools.partial(jax.jit, static_argnames=("tn",))
def qubite_forward(prepared, h_idx, r_idx, *, tn):
    h_idx = h_idx.reshape(-1)
    r_idx = r_idx.reshape(-1)

    E, R, R_psi = prepared["E"], prepared["R"], prepared["R_psi"]
    h = E[:, h_idx, :]                                   # (4, B, D)
    r = R[:, r_idx, :]                                   # (4, B, D)
    psi = R_psi[r_idx]                                   # (B, D)

    # QubitNorm(h), QubitNorm(r)   (E_bn identity in eval mode)
    h = h * jax.lax.rsqrt(jnp.sum(h * h, axis=0, keepdims=True))
    r = r * jax.lax.rsqrt(jnp.sum(r * r, axis=0, keepdims=True))
    har, hai, hbr, hbi = h[0], h[1], h[2], h[3]
    rar, rai, rbr, rbi = r[0], r[1], r[2], r[3]
    cz, sz = jnp.cos(psi), jnp.sin(psi)

    # QubitMult(h, r, psi)
    m1_re = har * rar - hai * rai                        # h_a * r_a
    m1_im = har * rai + hai * rar
    m2_re = hbr * rbr + hbi * rbi                        # h_b * conj(r_b)
    m2_im = hbi * rbr - hbr * rbi
    zm2_re = cz * m2_re - sz * m2_im
    zm2_im = cz * m2_im + sz * m2_re
    tar, tai = m1_re - zm2_re, m1_im - zm2_im

    m3_re = har * rbr - hai * rbi                        # h_a * r_b
    m3_im = har * rbi + hai * rbr
    m4_re = hbr * rar + hbi * rai                        # h_b * conj(r_a)
    m4_im = hbi * rar - hbr * rai
    zm4_re = cz * m4_re - sz * m4_im
    zm4_im = cz * m4_im + sz * m4_re
    tbr, tbi = m3_re + zm4_re, m3_im + zm4_im

    t = jnp.stack([tar, tai, tbr, tbi]).astype(jnp.bfloat16)   # (4, B, D)

    scores = qubite_scores(t, prepared["E_norm_T"], prepared["bias"], tn=tn)
    scores = scores[:, :, : E.shape[1]]                  # drop padded entities
    return scores[0], scores[1], scores[2], scores[3]


def init_params(key, num_entities, num_relations, embedding_dim):
    ks = jax.random.split(key, 3)
    E = 0.1 * jax.random.normal(ks[0], (4, num_entities, embedding_dim), jnp.float32)
    R = 0.1 * jax.random.normal(ks[1], (4, num_relations, embedding_dim), jnp.float32)
    R_psi = jax.random.normal(ks[2], (num_relations, embedding_dim), jnp.float32)
    zeros = jnp.zeros((num_entities,), jnp.float32)
    return {
        "E": E,          # (a_re, a_im, b_re, b_im) entity tables
        "R": R,          # (a_re, a_im, b_re, b_im) relation tables
        "R_psi": R_psi,
        "b_a": zeros, "b_x": zeros, "b_y": zeros, "b_z": zeros,
    }


# Pure-JAX f32 reference (same eval-mode semantics) for a correctness spot-check.
def _reference(params, h_idx, r_idx):
    def norm4(a_r, a_i, b_r, b_i):
        inv = 1.0 / jnp.sqrt(a_r * a_r + a_i * a_i + b_r * b_r + b_i * b_i)
        return a_r * inv, a_i * inv, b_r * inv, b_i * inv

    E, R = params["E"], params["R"]
    har, hai, hbr, hbi = norm4(*(E[c][h_idx] for c in range(4)))
    rar, rai, rbr, rbi = norm4(*(R[c][r_idx] for c in range(4)))
    psi = params["R_psi"][r_idx]
    cz, sz = jnp.cos(psi), jnp.sin(psi)
    m1 = (har * rar - hai * rai, har * rai + hai * rar)
    m2 = (hbr * rbr + hbi * rbi, hbi * rbr - hbr * rbi)
    zm2 = (cz * m2[0] - sz * m2[1], cz * m2[1] + sz * m2[0])
    tar, tai = m1[0] - zm2[0], m1[1] - zm2[1]
    m3 = (har * rbr - hai * rbi, har * rbi + hai * rbr)
    m4 = (hbr * rar + hbi * rai, hbi * rar - hbr * rai)
    zm4 = (cz * m4[0] - sz * m4[1], cz * m4[1] + sz * m4[0])
    tbr, tbi = m3[0] + zm4[0], m3[1] + zm4[1]
    ear, eai, ebr, ebi = norm4(E[0], E[1], E[2], E[3])
    hp = jax.lax.Precision.HIGHEST
    sa = jnp.dot(tar, ear.T, precision=hp) + params["b_a"]
    sx = jnp.dot(tai, eai.T, precision=hp) + params["b_x"]
    sy = jnp.dot(tbr, ebr.T, precision=hp) + params["b_y"]
    sb = jnp.dot(tbi, ebi.T, precision=hp) + params["b_z"]
    return tuple(jax.nn.sigmoid(s) for s in (sa, sx, sy, sb))


if __name__ == "__main__":
    num_entities = 256
    num_relations = 16
    embedding_dim = 32
    batch = 8

    key = jax.random.PRNGKey(0)
    pkey, hkey, rkey = jax.random.split(key, 3)
    params = init_params(pkey, num_entities, num_relations, embedding_dim)
    prepared, tn = prepare_params(params, batch_hint=batch)

    h_idx = jax.random.randint(hkey, (batch,), 0, num_entities, dtype=jnp.int32)
    r_idx = jax.random.randint(rkey, (batch,), 0, num_relations, dtype=jnp.int32)

    outs = qubite_forward(prepared, h_idx, r_idx, tn=tn)
    jax.block_until_ready(outs)
    y_a, y_ai, y_b, y_bi = outs

    assert y_a.shape == (batch, num_entities)
    assert y_ai.shape == (batch, num_entities)
    assert y_b.shape == (batch, num_entities)
    assert y_bi.shape == (batch, num_entities)
    assert bool(jnp.all(jnp.isfinite(jnp.stack(outs))))

    # bf16-streamed entity table -> compare post-sigmoid scores with a loose tolerance.
    refs = _reference(params, h_idx, r_idx)
    for got, ref in zip(outs, refs):
        assert bool(jnp.allclose(got, ref, atol=1e-2, rtol=0.0)), "mismatch vs reference"

    print("KERNEL_OK")
</pallas_src>

<mosaic_0001>
module attributes {stable_mosaic.version = 11 : i64} {
  func.func @_scoring_kernel(%arg0: i32, %arg1: memref<4x8x32xbf16, #tpu.memory_space<vmem>>, %arg2: memref<4x32x128xbf16, #tpu.memory_space<vmem>>, %arg3: memref<4x1x128xf32, #tpu.memory_space<vmem>>, %arg4: memref<4x8x128xf32, #tpu.memory_space<vmem>>) attributes {dimension_semantics = [#tpu.dimension_semantics<parallel>], iteration_bounds = array<i64: 2>, scalar_prefetch = 0 : i64, scratch_operands = 0 : i64, tpu.core_type = #tpu.core_type<tc>, window_params = [{pipeline_mode = #tpu.pipeline_mode<synchronous>, transform_indices = @transform_0, window_bounds = array<i64: 4, 8, 32>}, {transform_indices = @transform_1, window_bounds = array<i64: 4, 32, 128>}, {transform_indices = @transform_2, window_bounds = array<i64: 4, 1, 128>}, {transform_indices = @transform_3, window_bounds = array<i64: 4, 8, 128>}]} {
    %c0 = arith.constant 0 : index
    %c0_0 = arith.constant 0 : index
    %c0_1 = arith.constant 0 : index
    %0 = vector.load %arg1[%c0, %c0_0, %c0_1] : memref<4x8x32xbf16, #tpu.memory_space<vmem>>, vector<1x8x32xbf16>
    %1 = vector.shape_cast %0 : vector<1x8x32xbf16> to vector<8x32xbf16>
    %c0_2 = arith.constant 0 : index
    %c0_3 = arith.constant 0 : index
    %c0_4 = arith.constant 0 : index
    %2 = vector.load %arg2[%c0_2, %c0_3, %c0_4] : memref<4x32x128xbf16, #tpu.memory_space<vmem>>, vector<1x32x128xbf16>
    %3 = vector.shape_cast %2 : vector<1x32x128xbf16> to vector<32x128xbf16>
    %cst = arith.constant dense<0.000000e+00> : vector<8x128xf32>
    %4 = tpu.matmul %1, %3, %cst {dimension_numbers = #tpu.dot_dimension_numbers<[1], [0], [0], [1], [0, 0, 1, 1], [], []>} : vector<8x32xbf16>, vector<32x128xbf16>, vector<8x128xf32> -> vector<8x128xf32>
    %c0_5 = arith.constant 0 : index
    %c0_6 = arith.constant 0 : index
    %c0_7 = arith.constant 0 : index
    %5 = vector.load %arg3[%c0_5, %c0_6, %c0_7] : memref<4x1x128xf32, #tpu.memory_space<vmem>>, vector<1x1x128xf32>
    %6 = vector.shape_cast %5 : vector<1x1x128xf32> to vector<1x128xf32>
    %7 = vector.broadcast %6 : vector<1x128xf32> to vector<8x128xf32>
    %8 = arith.addf %4, %7 : vector<8x128xf32>
    %9 = arith.negf %8 : vector<8x128xf32>
    %10 = math.exp %9 : vector<8x128xf32>
    %cst_8 = arith.constant 1.000000e+00 : f32
    %11 = vector.broadcast %cst_8 : f32 to vector<8x128xf32>
    %12 = arith.addf %11, %10 : vector<8x128xf32>
    %13 = arith.divf %11, %12 : vector<8x128xf32>
    %c0_9 = arith.constant 0 : index
    %c0_10 = arith.constant 0 : index
    %c0_11 = arith.constant 0 : index
    %14 = vector.load %arg4[%c0_9, %c0_10, %c0_11] : memref<4x8x128xf32, #tpu.memory_space<vmem>>, vector<1x8x128xf32>
    %15 = vector.shape_cast %14 : vector<1x8x128xf32> to vector<8x128xf32>
    %16 = vector.shape_cast %13 : vector<8x128xf32> to vector<1x8x128xf32>
    tpu.vector_store %arg4[%c0_9, %c0_10, %c0_11], %16 {strides = array<i32>} : memref<4x8x128xf32, #tpu.memory_space<vmem>>, vector<1x8x128xf32>,
    %c1 = arith.constant 1 : index
    %c0_12 = arith.constant 0 : index
    %c0_13 = arith.constant 0 : index
    %17 = vector.load %arg1[%c1, %c0_12, %c0_13] : memref<4x8x32xbf16, #tpu.memory_space<vmem>>, vector<1x8x32xbf16>
    %18 = vector.shape_cast %17 : vector<1x8x32xbf16> to vector<8x32xbf16>
    %c1_14 = arith.constant 1 : index
    %c0_15 = arith.constant 0 : index
    %c0_16 = arith.constant 0 : index
    %19 = vector.load %arg2[%c1_14, %c0_15, %c0_16] : memref<4x32x128xbf16, #tpu.memory_space<vmem>>, vector<1x32x128xbf16>
    %20 = vector.shape_cast %19 : vector<1x32x128xbf16> to vector<32x128xbf16>
    %cst_17 = arith.constant dense<0.000000e+00> : vector<8x128xf32>
    %21 = tpu.matmul %18, %20, %cst_17 {dimension_numbers = #tpu.dot_dimension_numbers<[1], [0], [0], [1], [0, 0, 1, 1], [], []>} : vector<8x32xbf16>, vector<32x128xbf16>, vector<8x128xf32> -> vector<8x128xf32>
    %c1_18 = arith.constant 1 : index
    %c0_19 = arith.constant 0 : index
    %c0_20 = arith.constant 0 : index
    %22 = vector.load %arg3[%c1_18, %c0_19, %c0_20] : memref<4x1x128xf32, #tpu.memory_space<vmem>>, vector<1x1x128xf32>
    %23 = vector.shape_cast %22 : vector<1x1x128xf32> to vector<1x128xf32>
    %24 = vector.broadcast %23 : vector<1x128xf32> to vector<8x128xf32>
    %25 = arith.addf %21, %24 : vector<8x128xf32>
    %26 = arith.negf %25 : vector<8x128xf32>
    %27 = math.exp %26 : vector<8x128xf32>
    %cst_21 = arith.constant 1.000000e+00 : f32
    %28 = vector.broadcast %cst_21 : f32 to vector<8x128xf32>
    %29 = arith.addf %28, %27 : vector<8x128xf32>
    %30 = arith.divf %28, %29 : vector<8x128xf32>
    %c1_22 = arith.constant 1 : index
    %c0_23 = arith.constant 0 : index
    %c0_24 = arith.constant 0 : index
    %31 = vector.load %arg4[%c1_22, %c0_23, %c0_24] : memref<4x8x128xf32, #tpu.memory_space<vmem>>, vector<1x8x128xf32>
    %32 = vector.shape_cast %31 : vector<1x8x128xf32> to vector<8x128xf32>
    %33 = vector.shape_cast %30 : vector<8x128xf32> to vector<1x8x128xf32>
    tpu.vector_store %arg4[%c1_22, %c0_23, %c0_24], %33 {strides = array<i32>} : memref<4x8x128xf32, #tpu.memory_space<vmem>>, vector<1x8x128xf32>,
    %c2 = arith.constant 2 : index
    %c0_25 = arith.constant 0 : index
    %c0_26 = arith.constant 0 : index
    %34 = vector.load %arg1[%c2, %c0_25, %c0_26] : memref<4x8x32xbf16, #tpu.memory_space<vmem>>, vector<1x8x32xbf16>
    %35 = vector.shape_cast %34 : vector<1x8x32xbf16> to vector<8x32xbf16>
    %c2_27 = arith.constant 2 : index
    %c0_28 = arith.constant 0 : index
    %c0_29 = arith.constant 0 : index
    %36 = vector.load %arg2[%c2_27, %c0_28, %c0_29] : memref<4x32x128xbf16, #tpu.memory_space<vmem>>, vector<1x32x128xbf16>
    %37 = vector.shape_cast %36 : vector<1x32x128xbf16> to vector<32x128xbf16>
    %cst_30 = arith.constant dense<0.000000e+00> : vector<8x128xf32>
    %38 = tpu.matmul %35, %37, %cst_30 {dimension_numbers = #tpu.dot_dimension_numbers<[1], [0], [0], [1], [0, 0, 1, 1], [], []>} : vector<8x32xbf16>, vector<32x128xbf16>, vector<8x128xf32> -> vector<8x128xf32>
    %c2_31 = arith.constant 2 : index
    %c0_32 = arith.constant 0 : index
    %c0_33 = arith.constant 0 : index
    %39 = vector.load %arg3[%c2_31, %c0_32, %c0_33] : memref<4x1x128xf32, #tpu.memory_space<vmem>>, vector<1x1x128xf32>
    %40 = vector.shape_cast %39 : vector<1x1x128xf32> to vector<1x128xf32>
    %41 = vector.broadcast %40 : vector<1x128xf32> to vector<8x128xf32>
    %42 = arith.addf %38, %41 : vector<8x128xf32>
    %43 = arith.negf %42 : vector<8x128xf32>
    %44 = math.exp %43 : vector<8x128xf32>
    %cst_34 = arith.constant 1.000000e+00 : f32
    %45 = vector.broadcast %cst_34 : f32 to vector<8x128xf32>
    %46 = arith.addf %45, %44 : vector<8x128xf32>
    %47 = arith.divf %45, %46 : vector<8x128xf32>
    %c2_35 = arith.constant 2 : index
    %c0_36 = arith.constant 0 : index
    %c0_37 = arith.constant 0 : index
    %48 = vector.load %arg4[%c2_35, %c0_36, %c0_37] : memref<4x8x128xf32, #tpu.memory_space<vmem>>, vector<1x8x128xf32>
    %49 = vector.shape_cast %48 : vector<1x8x128xf32> to vector<8x128xf32>
    %50 = vector.shape_cast %47 : vector<8x128xf32> to vector<1x8x128xf32>
    tpu.vector_store %arg4[%c2_35, %c0_36, %c0_37], %50 {strides = array<i32>} : memref<4x8x128xf32, #tpu.memory_space<vmem>>, vector<1x8x128xf32>,
    %c3 = arith.constant 3 : index
    %c0_38 = arith.constant 0 : index
    %c0_39 = arith.constant 0 : index
    %51 = vector.load %arg1[%c3, %c0_38, %c0_39] : memref<4x8x32xbf16, #tpu.memory_space<vmem>>, vector<1x8x32xbf16>
    %52 = vector.shape_cast %51 : vector<1x8x32xbf16> to vector<8x32xbf16>
    %c3_40 = arith.constant 3 : index
    %c0_41 = arith.constant 0 : index
    %c0_42 = arith.constant 0 : index
    %53 = vector.load %arg2[%c3_40, %c0_41, %c0_42] : memref<4x32x128xbf16, #tpu.memory_space<vmem>>, vector<1x32x128xbf16>
    %54 = vector.shape_cast %53 : vector<1x32x128xbf16> to vector<32x128xbf16>
    %cst_43 = arith.constant dense<0.000000e+00> : vector<8x128xf32>
    %55 = tpu.matmul %52, %54, %cst_43 {dimension_numbers = #tpu.dot_dimension_numbers<[1], [0], [0], [1], [0, 0, 1, 1], [], []>} : vector<8x32xbf16>, vector<32x128xbf16>, vector<8x128xf32> -> vector<8x128xf32>
    %c3_44 = arith.constant 3 : index
    %c0_45 = arith.constant 0 : index
    %c0_46 = arith.constant 0 : index
    %56 = vector.load %arg3[%c3_44, %c0_45, %c0_46] : memref<4x1x128xf32, #tpu.memory_space<vmem>>, vector<1x1x128xf32>
    %57 = vector.shape_cast %56 : vector<1x1x128xf32> to vector<1x128xf32>
    %58 = vector.broadcast %57 : vector<1x128xf32> to vector<8x128xf32>
    %59 = arith.addf %55, %58 : vector<8x128xf32>
    %60 = arith.negf %59 : vector<8x128xf32>
    %61 = math.exp %60 : vector<8x128xf32>
    %cst_47 = arith.constant 1.000000e+00 : f32
    %62 = vector.broadcast %cst_47 : f32 to vector<8x128xf32>
    %63 = arith.addf %62, %61 : vector<8x128xf32>
    %64 = arith.divf %62, %63 : vector<8x128xf32>
    %c3_48 = arith.constant 3 : index
    %c0_49 = arith.constant 0 : index
    %c0_50 = arith.constant 0 : index
    %65 = vector.load %arg4[%c3_48, %c0_49, %c0_50] : memref<4x8x128xf32, #tpu.memory_space<vmem>>, vector<1x8x128xf32>
    %66 = vector.shape_cast %65 : vector<1x8x128xf32> to vector<8x128xf32>
    %67 = vector.shape_cast %64 : vector<8x128xf32> to vector<1x8x128xf32>
    tpu.vector_store %arg4[%c3_48, %c0_49, %c0_50], %67 {strides = array<i32>} : memref<4x8x128xf32, #tpu.memory_space<vmem>>, vector<1x8x128xf32>,
    return
  }
  func.func @transform_0(%arg0: i32) -> (i32, i32, i32) {
    %c0_i32 = arith.constant 0 : i32
    %c0_i32_0 = arith.constant 0 : i32
    %c0_i32_1 = arith.constant 0 : i32
    %c0_i32_2 = arith.constant 0 : i32
    return %c0_i32, %c0_i32_0, %c0_i32_1 : i32, i32, i32
  }
  func.func @transform_1(%arg0: i32) -> (i32, i32, i32) {
    %c0_i32 = arith.constant 0 : i32
    %c0_i32_0 = arith.constant 0 : i32
    %c0_i32_1 = arith.constant 0 : i32
    return %c0_i32, %c0_i32_0, %arg0 : i32, i32, i32
  }
  func.func @transform_2(%arg0: i32) -> (i32, i32, i32) {
    %c0_i32 = arith.constant 0 : i32
    %c0_i32_0 = arith.constant 0 : i32
    %c0_i32_1 = arith.constant 0 : i32
    return %c0_i32, %c0_i32_0, %arg0 : i32, i32, i32
  }
  func.func @transform_3(%arg0: i32) -> (i32, i32, i32) {
    %c0_i32 = arith.constant 0 : i32
    %c0_i32_0 = arith.constant 0 : i32
    %c0_i32_1 = arith.constant 0 : i32
    return %c0_i32, %c0_i32_0, %arg0 : i32, i32, i32
  }
}

</mosaic_0001>

<llo_original>
// kernel: qubite_forward.1
$region0: #{qubite_forward.1}
  #allocation0 [shape = 'u32[]', space=smem, size = 0x4, offset = 0x4, fixed_abs, tag = 'smem constant byte address 0x4 - core index']
  #allocation1 [shape = 'u32[72,128]{1,0:T(1,128)}', space=vmem, size = 0x9000, scoped, tag = 'internal scratch']
  %s0 = inlined_call_operand.vmem [shape: bf16[4,8,32], index: 0, kind: input, shape index: {}]
  %s1 = inlined_call_operand.vmem [shape: bf16[4,32,256], index: 1, kind: input, shape index: {}]
  %s2 = inlined_call_operand.vmem [shape: f32[4,1,256], index: 2, kind: input, shape index: {}]
  %s3 = inlined_call_operand.vmem [shape: f32[4,8,256], index: 3, kind: output, shape index: {}]
  %s4 = sld [smem:[#allocation0]]
  $region154: #{qubite_forward.1} parent=0
    _
  %s6 = ssub.s32 1, %s4
  %s7 = scalar_select 0, %s6, %s4
  $region1: #{qubite_forward.1} parent=0
    #allocation2 [shape = 'u8[65536]{0}', space=vmem, size = 0x10000, scoped, tag = 'input window, operand 1']
    #allocation3 [shape = 'u8[4096]{0}', space=vmem, size = 0x1000, scoped, tag = 'input window, operand 2']
    #allocation4 [shape = 'u8[32768]{0}', space=vmem, size = 0x8000, scoped, tag = 'output window, operand 0']
    loop: start=0, step=1, limit=4
    $region2: #{qubite_forward.1} parent=1 // loop_pre_header
      _
    $region3: #{qubite_forward.1} parent=1 // loop_header
      %s9 = sphi 0, %s13
      %p10 = scmp.ge.s32.totalorder %s9, 4
      %s17 = sphi 0, %s17
      %s19 = sphi 0, %s17
      %s20 = sphi 0, %s19
      %s34 = sphi 0, %s20
      %s40 = sphi 0, %s42
      %s43 = sphi 0, %s40
      %s44 = sphi 0, %s43
      %s60 = sphi 0, %s44
      %s66 = sphi 0, %s68
      %s69 = sphi 0, %s66
      %s70 = sphi 0, %s69
      %s86 = sphi 0, %s70
      %s92 = sphi 0, %s94
      %s95 = sphi 0, %s92
      %s96 = sphi 0, %s95
      %s112 = sphi 0, %s96
    $region4: #{qubite_forward.1} parent=1 // loop_header_branch
      %12 = sbr.rel (%p10) target = $region8
    $region5: #{qubite_forward.1} parent=1 // loop_body
      %s14 = ssub.s32 %s9, 1
      %s15 = ssub.s32 %s9, 2
      %s16 = sadd.s32 %s9, 1
      %s18 = sadd.s32 %s17, 1
      %p21 = scmp.eq.s32.totalorder %s9, 1
      %p22 = scmp.ne.s32.totalorder %s17, %s19
      %p23 = scmp.eq.s32.totalorder %s9, 0
      %p24 = por %p22, %p23
      %p25 = scmp.ne.s32.totalorder %s17, %s19
      %p26 = scmp.eq.s32.totalorder %s14, 1
      %p27 = por %p25, %p26
      %p28 = scmp.ne.s32.totalorder %s19, %s20
      %p29 = scmp.eq.s32.totalorder %s14, 0
      %p30 = por %p28, %p29
      %p31 = scmp.ne.s32.totalorder %s19, %s20
      %p32 = scmp.eq.s32.totalorder %s15, 1
      %p33 = por %p31, %p32
      %p35 = scmp.ne.s32.totalorder %s20, %s34
      %p36 = scmp.eq.s32.totalorder %s15, 0
      %p37 = por %p35, %p36
      %s38 = ssub.s32 %s9, %s16
      %p39 = scmp.eq.s32.totalorder %s38, 0
      %s41 = sadd.s32 %s40, 1
      %s42 = scalar_select %p39, %s40, %s41
      %p45 = pneg %p39
      %p46 = scmp.eq.s32.totalorder %s9, 1
      %p47 = por %p45, %p46
      %p48 = scmp.ne.s32.totalorder %s40, %s43
      %p49 = scmp.eq.s32.totalorder %s9, 0
      %p50 = por %p48, %p49
      %p51 = scmp.ne.s32.totalorder %s40, %s43
      %p52 = scmp.eq.s32.totalorder %s14, 1
      %p53 = por %p51, %p52
      %p54 = scmp.ne.s32.totalorder %s43, %s44
      %p55 = scmp.eq.s32.totalorder %s14, 0
      %p56 = por %p54, %p55
      %p57 = scmp.ne.s32.totalorder %s43, %s44
      %p58 = scmp.eq.s32.totalorder %s15, 1
      %p59 = por %p57, %p58
      %p61 = scmp.ne.s32.totalorder %s44, %s60
      %p62 = scmp.eq.s32.totalorder %s15, 0
      %p63 = por %p61, %p62
      %s64 = ssub.s32 %s9, %s16
      %p65 = scmp.eq.s32.totalorder %s64, 0
      %s67 = sadd.s32 %s66, 1
      %s68 = scalar_select %p65, %s66, %s67
      %p71 = pneg %p65
      %p72 = scmp.eq.s32.totalorder %s9, 1
      %p73 = por %p71, %p72
      %p74 = scmp.ne.s32.totalorder %s66, %s69
      %p75 = scmp.eq.s32.totalorder %s9, 0
      %p76 = por %p74, %p75
      %p77 = scmp.ne.s32.totalorder %s66, %s69
      %p78 = scmp.eq.s32.totalorder %s14, 1
      %p79 = por %p77, %p78
      %p80 = scmp.ne.s32.totalorder %s69, %s70
      %p81 = scmp.eq.s32.totalorder %s14, 0
      %p82 = por %p80, %p81
      %p83 = scmp.ne.s32.totalorder %s69, %s70
      %p84 = scmp.eq.s32.totalorder %s15, 1
      %p85 = por %p83, %p84
      %p87 = scmp.ne.s32.totalorder %s70, %s86
      %p88 = scmp.eq.s32.totalorder %s15, 0
      %p89 = por %p87, %p88
      %s90 = ssub.s32 %s9, %s16
      %p91 = scmp.eq.s32.totalorder %s90, 0
      %s93 = sadd.s32 %s92, 1
      %s94 = scalar_select %p91, %s92, %s93
      %p97 = pneg %p91
      %p98 = scmp.eq.s32.totalorder %s9, 1
      %p99 = por %p97, %p98
      %p100 = scmp.ne.s32.totalorder %s92, %s95
      %p101 = scmp.eq.s32.totalorder %s9, 0
      %p102 = por %p100, %p101
      %p103 = scmp.ne.s32.totalorder %s92, %s95
      %p104 = scmp.eq.s32.totalorder %s14, 1
      %p105 = por %p103, %p104
      %p106 = scmp.ne.s32.totalorder %s95, %s96
      %p107 = scmp.eq.s32.totalorder %s14, 0
      %p108 = por %p106, %p107
      %p109 = scmp.ne.s32.totalorder %s95, %s96
      %p110 = scmp.eq.s32.totalorder %s15, 1
      %p111 = por %p109, %p110
      %p113 = scmp.ne.s32.totalorder %s96, %s112
      %p114 = scmp.eq.s32.totalorder %s15, 0
      %p115 = por %p113, %p114
      %p116 = scmp.le.s32.totalorder 1, %s9
      %p117 = scmp.lt.s32.totalorder %s9, 3
      %p118 = pnand %p116, %p117
      %p119 = pneg %p118
      // Predicated region
      $region9: #{qubite_forward.1} parent=5 // pred_check
        _
      $region10: #{qubite_forward.1} parent=5 // pred_check_branch
        %121 = sbr.rel (%p118) target = $region12
      $region11: #{qubite_forward.1} parent=5 // pred_region
        %s122 = ssub.s32 %s9, 1
        // Predicated region
        $region13: #{qubite_forward.1} parent=11 // pred_check
          %p123 = pneg %p30
        $region14: #{qubite_forward.1} parent=11 // pred_check_branch
          %125 = sbr.rel (%p123) target = $region16
        $region15: #{qubite_forward.1} parent=11 // pred_region
          _
        $region16: #{qubite_forward.1} parent=11 // pred_fallthru
          _
      $region12: #{qubite_forward.1} parent=5 // pred_fallthru
        _
      %p126 = scmp.lt.s32.totalorder %s9, 2
      // Predicated region
      $region17: #{qubite_forward.1} parent=5 // pred_check
        %p127 = pneg %p126
      $region18: #{qubite_forward.1} parent=5 // pred_check_branch
        %129 = sbr.rel (%p127) target = $region20
      $region19: #{qubite_forward.1} parent=5 // pred_region
        // Predicated region
        $region21: #{qubite_forward.1} parent=19 // pred_check
          %p130 = pneg %p50
        $region22: #{qubite_forward.1} parent=19 // pred_check_branch
          %132 = sbr.rel (%p130) target = $region24
        $region23: #{qubite_forward.1} parent=19 // pred_region
          %s133 = sand.u32 %s40, 1
          %s134 = sand.u32 %s40, 1
          %s135 = smul.addr %s134, 64
          %s136 = scalar_lea.vmem [#allocation2], %s135
          %s137 = smul.addr %s9, 4
          %s138 = scalar_lea.vmem %s1, %s137
          // Predicated region
          $region25: #{qubite_forward.1} parent=23 // pred_check
            _
          $region26: #{qubite_forward.1} parent=23 // pred_check_branch
            %140 = sbr.rel (0) target = $region28
          $region27: #{qubite_forward.1} parent=23 // pred_region
            // Predicated region
            $region29: #{qubite_forward.1} parent=27 // pred_check
              _
            $region30: #{qubite_forward.1} parent=27 // pred_check_branch
              %142 = sbr.rel target = $region32
            $region31: #{qubite_forward.1} parent=27 // pred_region
              // Predicated region
              $region44: #{qubite_forward.1} parent=31 // pred_check
                _
              $region45: #{qubite_forward.1} parent=31 // pred_check_branch
                %188 = sbr.rel (0) target = $region47
              $region46: #{qubite_forward.1} parent=31 // pred_region
                loop: start=0, step=1, limit=1
                $region48: #{qubite_forward.1} parent=46 // loop_pre_header
                  _
                $region49: #{qubite_forward.1} parent=46 // loop_header
                  %s190 = sphi 0, %s194
                  %p191 = scmp.ge.s32.totalorder %s190, 1
                  %s195 = sphi %s138, %s138
                  %s196 = sphi %s136, %s136
                $region50: #{qubite_forward.1} parent=46 // loop_header_branch
                  %193 = sbr.rel (%p191) target = $region54
                $region51: #{qubite_forward.1} parent=46 // loop_body
                  _
                $region52: #{qubite_forward.1} parent=46 // loop_footer
                  %s194 = sadd.s32 1, %s190
                $region53: #{qubite_forward.1} parent=46 // loop_footer_branch
                  %189 = sbr.rel target = $region49
                $region54: #{qubite_forward.1} parent=46 // loop_exit
                  _
                %s198 = ssub.s32 16, 1
                loop: start=0, step=1, limit=1
                $region55: #{qubite_forward.1} parent=46 // loop_pre_header
                  _
                $region56: #{qubite_forward.1} parent=46 // loop_header
                  %s200 = sphi 0, %s204
                  %p201 = scmp.ge.s32.totalorder %s200, 1
                  %s205 = sphi %s138, %s138
                  %s206 = sphi %s136, %s136
                $region57: #{qubite_forward.1} parent=46 // loop_header_branch
                  %203 = sbr.rel (%p201) target = $region61
                $region58: #{qubite_forward.1} parent=46 // loop_body
                  %v207 = vld [vmem:[%s205] sm:%s198]
                  %208 = vst [vmem:[%s206] sm:%s198] %v207
                  %v209 = vld [vmem:[%s205 + $0x8] sm:%s198]
                  %210 = vst [vmem:[%s206 + $0x4] sm:%s198] %v209
                  %v211 = vld [vmem:[%s205 + $0x10] sm:%s198]
                  %212 = vst [vmem:[%s206 + $0x8] sm:%s198] %v211
                  %v213 = vld [vmem:[%s205 + $0x18] sm:%s198]
                  %214 = vst [vmem:[%s206 + $0xc] sm:%s198] %v213
                  %v215 = vld [vmem:[%s205 + $0x20] sm:%s198]
                  %216 = vst [vmem:[%s206 + $0x10] sm:%s198] %v215
                  %v217 = vld [vmem:[%s205 + $0x28] sm:%s198]
                  %218 = vst [vmem:[%s206 + $0x14] sm:%s198] %v217
                  %v219 = vld [vmem:[%s205 + $0x30] sm:%s198]
                  %220 = vst [vmem:[%s206 + $0x18] sm:%s198] %v219
                  %v221 = vld [vmem:[%s205 + $0x38] sm:%s198]
                  %222 = vst [vmem:[%s206 + $0x1c] sm:%s198] %v221
                  %v223 = vld [vmem:[%s205 + $0x40] sm:%s198]
                  %224 = vst [vmem:[%s206 + $0x20] sm:%s198] %v223
                  %v225 = vld [vmem:[%s205 + $0x48] sm:%s198]
                  %226 = vst [vmem:[%s206 + $0x24] sm:%s198] %v225
                  %v227 = vld [vmem:[%s205 + $0x50] sm:%s198]
                  %228 = vst [vmem:[%s206 + $0x28] sm:%s198] %v227
                  %v229 = vld [vmem:[%s205 + $0x58] sm:%s198]
                  %230 = vst [vmem:[%s206 + $0x2c] sm:%s198] %v229
                  %v231 = vld [vmem:[%s205 + $0x60] sm:%s198]
                  %232 = vst [vmem:[%s206 + $0x30] sm:%s198] %v231
                  %v233 = vld [vmem:[%s205 + $0x68] sm:%s198]
                  %234 = vst [vmem:[%s206 + $0x34] sm:%s198] %v233
                  %v235 = vld [vmem:[%s205 + $0x70] sm:%s198]
                  %236 = vst [vmem:[%s206 + $0x38] sm:%s198] %v235
                  %v237 = vld [vmem:[%s205 + $0x78] sm:%s198]
                  %238 = vst [vmem:[%s206 + $0x3c] sm:%s198] %v237
                $region59: #{qubite_forward.1} parent=46 // loop_footer
                  %s204 = sadd.s32 1, %s200
                $region60: #{qubite_forward.1} parent=46 // loop_footer_branch
                  %199 = sbr.rel target = $region56
                $region61: #{qubite_forward.1} parent=46 // loop_exit
                  _
              $region47: #{qubite_forward.1} parent=31 // pred_fallthru
                _
            $region32: #{qubite_forward.1} parent=27 // pred_fallthru
              _
            // Predicated region
            $region33: #{qubite_forward.1} parent=27 // pred_check
              _
            $region34: #{qubite_forward.1} parent=27 // pred_check_branch
              %144 = sbr.rel (0) target = $region36
            $region35: #{qubite_forward.1} parent=27 // pred_region
              %s146 = ssub.s32 16, 1
              loop: start=0, step=1, limit=1
              $region37: #{qubite_forward.1} parent=35 // loop_pre_header
                _
              $region38: #{qubite_forward.1} parent=35 // loop_header
                %s148 = sphi 0, %s152
                %p149 = scmp.ge.s32.totalorder %s148, 1
                %s153 = sphi %s138, %s138
                %s154 = sphi %s136, %s136
              $region39: #{qubite_forward.1} parent=35 // loop_header_branch
                %151 = sbr.rel (%p149) target = $region43
              $region40: #{qubite_forward.1} parent=35 // loop_body
                %v155 = vld [vmem:[%s153] sm:%s146]
                %156 = vst [vmem:[%s154] sm:%s146] %v155
                %v157 = vld [vmem:[%s153 + $0x8] sm:%s146]
                %158 = vst [vmem:[%s154 + $0x4] sm:%s146] %v157
                %v159 = vld [vmem:[%s153 + $0x10] sm:%s146]
                %160 = vst [vmem:[%s154 + $0x8] sm:%s146] %v159
                %v161 = vld [vmem:[%s153 + $0x18] sm:%s146]
                %162 = vst [vmem:[%s154 + $0xc] sm:%s146] %v161
                %v163 = vld [vmem:[%s153 + $0x20] sm:%s146]
                %164 = vst [vmem:[%s154 + $0x10] sm:%s146] %v163
                %v165 = vld [vmem:[%s153 + $0x28] sm:%s146]
                %166 = vst [vmem:[%s154 + $0x14] sm:%s146] %v165
                %v167 = vld [vmem:[%s153 + $0x30] sm:%s146]
                %168 = vst [vmem:[%s154 + $0x18] sm:%s146] %v167
                %v169 = vld [vmem:[%s153 + $0x38] sm:%s146]
                %170 = vst [vmem:[%s154 + $0x1c] sm:%s146] %v169
                %v171 = vld [vmem:[%s153 + $0x40] sm:%s146]
                %172 = vst [vmem:[%s154 + $0x20] sm:%s146] %v171
                %v173 = vld [vmem:[%s153 + $0x48] sm:%s146]
                %174 = vst [vmem:[%s154 + $0x24] sm:%s146] %v173
                %v175 = vld [vmem:[%s153 + $0x50] sm:%s146]
                %176 = vst [vmem:[%s154 + $0x28] sm:%s146] %v175
                %v177 = vld [vmem:[%s153 + $0x58] sm:%s146]
                %178 = vst [vmem:[%s154 + $0x2c] sm:%s146] %v177
                %v179 = vld [vmem:[%s153 + $0x60] sm:%s146]
                %180 = vst [vmem:[%s154 + $0x30] sm:%s146] %v179
                %v181 = vld [vmem:[%s153 + $0x68] sm:%s146]
                %182 = vst [vmem:[%s154 + $0x34] sm:%s146] %v181
                %v183 = vld [vmem:[%s153 + $0x70] sm:%s146]
                %184 = vst [vmem:[%s154 + $0x38] sm:%s146] %v183
                %v185 = vld [vmem:[%s153 + $0x78] sm:%s146]
                %186 = vst [vmem:[%s154 + $0x3c] sm:%s146] %v185
              $region41: #{qubite_forward.1} parent=35 // loop_footer
                %s152 = sadd.s32 1, %s148
              $region42: #{qubite_forward.1} parent=35 // loop_footer_branch
                %147 = sbr.rel target = $region38
              $region43: #{qubite_forward.1} parent=35 // loop_exit
                _
            $region36: #{qubite_forward.1} parent=27 // pred_fallthru
              _
          $region28: #{qubite_forward.1} parent=23 // pred_fallthru
            _
          %239 = vnop
        $region24: #{qubite_forward.1} parent=19 // pred_fallthru
          _
        // Predicated region
        $region62: #{qubite_forward.1} parent=19 // pred_check
          %p240 = pneg %p76
        $region63: #{qubite_forward.1} parent=19 // pred_check_branch
          %242 = sbr.rel (%p240) target = $region65
        $region64: #{qubite_forward.1} parent=19 // pred_region
          %s243 = sand.u32 %s66, 1
          %s244 = sand.u32 %s66, 1
          %s245 = smul.addr %s244, 4
          %s246 = scalar_lea.vmem [#allocation3], %s245
          %s247 = scalar_lea.vmem %s2, %s9
          // Predicated region
          $region66: #{qubite_forward.1} parent=64 // pred_check
            _
          $region67: #{qubite_forward.1} parent=64 // pred_check_branch
            %249 = sbr.rel (0) target = $region69
          $region68: #{qubite_forward.1} parent=64 // pred_region
            // Predicated region
            $region70: #{qubite_forward.1} parent=68 // pred_check
              _
            $region71: #{qubite_forward.1} parent=68 // pred_check_branch
              %251 = sbr.rel target = $region73
            $region72: #{qubite_forward.1} parent=68 // pred_region
              // Predicated region
              $region85: #{qubite_forward.1} parent=72 // pred_check
                _
              $region86: #{qubite_forward.1} parent=72 // pred_check_branch
                %273 = sbr.rel (0) target = $region88
              $region87: #{qubite_forward.1} parent=72 // pred_region
                %s275 = ssub.s32 2, 1
                loop: start=0, step=1, limit=1
                $region89: #{qubite_forward.1} parent=87 // loop_pre_header
                  _
                $region90: #{qubite_forward.1} parent=87 // loop_header
                  %s277 = sphi 0, %s281
                  %p278 = scmp.ge.s32.totalorder %s277, 1
                  %s282 = sphi %s247, %s247
                  %s283 = sphi %s246, %s246
                $region91: #{qubite_forward.1} parent=87 // loop_header_branch
                  %280 = sbr.rel (%p278) target = $region95
                $region92: #{qubite_forward.1} parent=87 // loop_body
                  %v284 = vld [vmem:[%s282] sm:%s275]
                  %285 = vst [vmem:[%s283] sm:%s275] %v284
                  %v286 = vld [vmem:[%s282 + $0x2] sm:%s275]
                  %287 = vst [vmem:[%s283 + $0x1] sm:%s275] %v286
                  %v288 = vld [vmem:[%s282 + $0x4] sm:%s275]
                  %289 = vst [vmem:[%s283 + $0x2] sm:%s275] %v288
                  %v290 = vld [vmem:[%s282 + $0x6] sm:%s275]
                  %291 = vst [vmem:[%s283 + $0x3] sm:%s275] %v290
                $region93: #{qubite_forward.1} parent=87 // loop_footer
                  %s281 = sadd.s32 1, %s277
                $region94: #{qubite_forward.1} parent=87 // loop_footer_branch
                  %276 = sbr.rel target = $region90
                $region95: #{qubite_forward.1} parent=87 // loop_exit
                  _
              $region88: #{qubite_forward.1} parent=72 // pred_fallthru
                _
            $region73: #{qubite_forward.1} parent=68 // pred_fallthru
              _
            // Predicated region
            $region74: #{qubite_forward.1} parent=68 // pred_check
              _
            $region75: #{qubite_forward.1} parent=68 // pred_check_branch
              %253 = sbr.rel (0) target = $region77
            $region76: #{qubite_forward.1} parent=68 // pred_region
              %s255 = ssub.s32 2, 1
              loop: start=0, step=1, limit=1
              $region78: #{qubite_forward.1} parent=76 // loop_pre_header
                _
              $region79: #{qubite_forward.1} parent=76 // loop_header
                %s257 = sphi 0, %s261
                %p258 = scmp.ge.s32.totalorder %s257, 1
                %s262 = sphi %s247, %s247
                %s263 = sphi %s246, %s246
              $region80: #{qubite_forward.1} parent=76 // loop_header_branch
                %260 = sbr.rel (%p258) target = $region84
              $region81: #{qubite_forward.1} parent=76 // loop_body
                %v264 = vld [vmem:[%s262] sm:%s255]
                %265 = vst [vmem:[%s263] sm:%s255] %v264
                %v266 = vld [vmem:[%s262 + $0x2] sm:%s255]
                %267 = vst [vmem:[%s263 + $0x1] sm:%s255] %v266
                %v268 = vld [vmem:[%s262 + $0x4] sm:%s255]
                %269 = vst [vmem:[%s263 + $0x2] sm:%s255] %v268
                %v270 = vld [vmem:[%s262 + $0x6] sm:%s255]
                %271 = vst [vmem:[%s263 + $0x3] sm:%s255] %v270
              $region82: #{qubite_forward.1} parent=76 // loop_footer
                %s261 = sadd.s32 1, %s257
              $region83: #{qubite_forward.1} parent=76 // loop_footer_branch
                %256 = sbr.rel target = $region79
              $region84: #{qubite_forward.1} parent=76 // loop_exit
                _
            $region77: #{qubite_forward.1} parent=68 // pred_fallthru
              _
          $region69: #{qubite_forward.1} parent=64 // pred_fallthru
            _
          %292 = vnop
        $region65: #{qubite_forward.1} parent=19 // pred_fallthru
          _
      $region20: #{qubite_forward.1} parent=5 // pred_fallthru
        _
      %p293 = scmp.le.s32.totalorder 1, %s9
      %p294 = scmp.lt.s32.totalorder %s9, 3
      %p295 = pnand %p293, %p294
      %p296 = pneg %p295
      // Predicated region
      $region96: #{qubite_forward.1} parent=5 // pred_check
        _
      $region97: #{qubite_forward.1} parent=5 // pred_check_branch
        %298 = sbr.rel (%p295) target = $region99
      $region98: #{qubite_forward.1} parent=5 // pred_region
        %s299 = ssub.s32 %s9, 1
        %s300 = sand.u32 %s43, 1
        %s301 = sand.u32 %s43, 1
        %s302 = smul.addr %s301, 64
        %s303 = scalar_lea.vmem [#allocation2], %s302
        // Predicated region
        $region100: #{qubite_forward.1} parent=98 // pred_check
          %p304 = pneg %p56
        $region101: #{qubite_forward.1} parent=98 // pred_check_branch
          %306 = sbr.rel (%p304) target = $region103
        $region102: #{qubite_forward.1} parent=98 // pred_region
          _
        $region103: #{qubite_forward.1} parent=98 // pred_fallthru
          _
        %s307 = sand.u32 %s69, 1
        %s308 = sand.u32 %s69, 1
        %s309 = smul.addr %s308, 4
        %s310 = scalar_lea.vmem [#allocation3], %s309
        // Predicated region
        $region104: #{qubite_forward.1} parent=98 // pred_check
          %p311 = pneg %p82
        $region105: #{qubite_forward.1} parent=98 // pred_check_branch
          %313 = sbr.rel (%p311) target = $region107
        $region106: #{qubite_forward.1} parent=98 // pred_region
          _
        $region107: #{qubite_forward.1} parent=98 // pred_fallthru
          _
        %p314 = pneg %p30
        %p315 = pneg %p27
        %s316 = sand.u32 %s43, 1
        %s317 = sand.u32 %s43, 1
        %s318 = smul.addr %s317, 64
        %s319 = scalar_lea.vmem [#allocation2], %s318
        %p320 = pneg %p56
        %p321 = pneg %p53
        %s322 = sand.u32 %s69, 1
        %s323 = sand.u32 %s69, 1
        %s324 = smul.addr %s323, 4
        %s325 = scalar_lea.vmem [#allocation3], %s324
        %p326 = pneg %p82
        %p327 = pneg %p79
        %p328 = pneg %p108
        %p329 = pneg %p105
        %s330 = sand.u32 %s95, 1
        %s331 = sand.u32 %s95, 1
        %s332 = smul.addr %s331, 32
        %s333 = scalar_lea.vmem [#allocation4], %s332
        %v335 = vld [vmem:[%s0] sm:$0xf]
        %v336 = vld [vmem:[%s303] sm:$0xf]
        %v337 = vld [vmem:[%s303 + $0x4] sm:$0xf]
        %v338 = vld [vmem:[%s303 + $0x8] sm:$0xf]
        %v339 = vld [vmem:[%s303 + $0xc] sm:$0xf]
        %v340 = vld [vmem:[%s310] sm:$0x1]
        %v342 = vperm.slane %v340, 0
        %v348 = vunpack.c.l.b16 %v336
        %v349 = vunpack.c.l.b16 %v337
        %v350 = vunpack.c.l.b16 %v338
        %v351 = vunpack.c.l.b16 %v339
        %v352 = vpack.c.b16 %v349, %v348
        %v353 = vpack.c.b16 %v351, %v350
        %vm356 = vcmask 261120
        %v358 = vsel %vm356, %v335, 0
        %360 = vmatpush.bf16.msra.mxu0 0
        %361 = vmatpush.bf16.msra.mxu0 0
        %362 = vmatpush.bf16.msra.mxu0 0
        %363 = vmatpush.bf16.msra.mxu0 0
        %364 = vmatpush.bf16.msra.mxu0 0
        %365 = vmatpush.bf16.msra.mxu0 0
        %366 = vmatpush.bf16.msra.mxu0 %v353
        %367 = vmatpush.bf16.msra.mxu0 %v352
        %368 = vmatmul.bf16.gmra.mxu0 %v358
        %v369 = vpop.f32.mrf.mxu0
        %v370 = vadd.f32 %v342, %v369
        %v371 = vpop.f32.mrf.mxu0
        %372 = vdwg.mxu0
        %v373 = vxor.u32 %v370, 2147483648
        %v374 = vmul.f32 %v373, 1.442695
        %v375 = vpow.pop %v374
        %v376 = vadd.f32 %v375, 1.0
        %v377 = vrcp.pop %v376
        %v378 = vmul.f32 %v376, %v377
        %v379 = vsub.f32 1.0, %v378
        %v380 = vmul.f32 %v377, %v379
        %v381 = vadd.f32 %v377, %v380
        %vm382 = vweird.f32 %v376
        %vm383 = vweird.f32 %v377
        %vm384 = vmor %vm382, %vm383
        %v385 = vsel %vm384, %v377, %v381
        %v386 = vand.u32 2147483647, %v376
        %vm387 = vcmp.eq.f32.partialorder %v386, 8.507059e+37
        %v388 = vand.u32 %v376, 2147483648
        %v389 = vor.u32 1.1754944e-38, %v388
        %v390 = vsel %vm387, %v389, %v385
        %v391 = vmul.f32 1.0, %v390
        %392 = vst [vmem:[%s333] sm:$0xff] %v391
        %s393 = scalar_lea.vmem %s0, 4
        %v394 = vld [vmem:[%s393] sm:$0xf]
        %s395 = scalar_lea.vmem %s303, 16 [#allocation2]
        %v396 = vld [vmem:[%s395] sm:$0xf]
        %v397 = vld [vmem:[%s395 + $0x4] sm:$0xf]
        %v398 = vld [vmem:[%s395 + $0x8] sm:$0xf]
        %v399 = vld [vmem:[%s395 + $0xc] sm:$0xf]
        %s400 = scalar_lea.vmem %s310, 1 [#allocation3]
        %v401 = vld [vmem:[%s400] sm:$0x1]
        %v403 = vperm.slane %v401, 0
        %v409 = vunpack.c.l.b16 %v396
        %v410 = vunpack.c.l.b16 %v397
        %v411 = vunpack.c.l.b16 %v398
        %v412 = vunpack.c.l.b16 %v399
        %v413 = vpack.c.b16 %v410, %v409
        %v414 = vpack.c.b16 %v412, %v411
        %v418 = vsel %vm356, %v394, 0
        %420 = vmatpush.bf16.msra.mxu0 0
        %421 = vmatpush.bf16.msra.mxu0 0
        %422 = vmatpush.bf16.msra.mxu0 0
        %423 = vmatpush.bf16.msra.mxu0 0
        %424 = vmatpush.bf16.msra.mxu0 0
        %425 = vmatpush.bf16.msra.mxu0 0
        %426 = vmatpush.bf16.msra.mxu0 %v414
        %427 = vmatpush.bf16.msra.mxu0 %v413
        %428 = vmatmul.bf16.gmra.mxu0 %v418
        %v429 = vpop.f32.mrf.mxu0
        %v430 = vadd.f32 %v403, %v429
        %v431 = vpop.f32.mrf.mxu0
        %432 = vdwg.mxu0
        %v433 = vxor.u32 %v430, 2147483648
        %v434 = vmul.f32 %v433, 1.442695
        %v435 = vpow.pop %v434
        %v436 = vadd.f32 %v435, 1.0
        %v437 = vrcp.pop %v436
        %v438 = vmul.f32 %v436, %v437
        %v439 = vsub.f32 1.0, %v438
        %v440 = vmul.f32 %v437, %v439
        %v441 = vadd.f32 %v437, %v440
        %vm442 = vweird.f32 %v436
        %vm443 = vweird.f32 %v437
        %vm444 = vmor %vm442, %vm443
        %v445 = vsel %vm444, %v437, %v441
        %v446 = vand.u32 2147483647, %v436
        %vm447 = vcmp.eq.f32.partialorder %v446, 8.507059e+37
        %v448 = vand.u32 %v436, 2147483648
        %v449 = vor.u32 1.1754944e-38, %v448
        %v450 = vsel %vm447, %v449, %v445
        %v451 = vmul.f32 1.0, %v450
        %s452 = scalar_lea.vmem %s333, 8 [#allocation4]
        %453 = vst [vmem:[%s452] sm:$0xff] %v451
        %s454 = scalar_lea.vmem %s0, 8
        %v455 = vld [vmem:[%s454] sm:$0xf]
        %s456 = scalar_lea.vmem %s303, 32 [#allocation2]
        %v457 = vld [vmem:[%s456] sm:$0xf]
        %v458 = vld [vmem:[%s456 + $0x4] sm:$0xf]
        %v459 = vld [vmem:[%s456 + $0x8] sm:$0xf]
        %v460 = vld [vmem:[%s456 + $0xc] sm:$0xf]
        %s461 = scalar_lea.vmem %s310, 2 [#allocation3]
        %v462 = vld [vmem:[%s461] sm:$0x1]
        %v464 = vperm.slane %v462, 0
        %v470 = vunpack.c.l.b16 %v457
        %v471 = vunpack.c.l.b16 %v458
        %v472 = vunpack.c.l.b16 %v459
        %v473 = vunpack.c.l.b16 %v460
        %v474 = vpack.c.b16 %v471, %v470
        %v475 = vpack.c.b16 %v473, %v472
        %v479 = vsel %vm356, %v455, 0
        %481 = vmatpush.bf16.msra.mxu0 0
        %482 = vmatpush.bf16.msra.mxu0 0
        %483 = vmatpush.bf16.msra.mxu0 0
        %484 = vmatpush.bf16.msra.mxu0 0
        %485 = vmatpush.bf16.msra.mxu0 0
        %486 = vmatpush.bf16.msra.mxu0 0
        %487 = vmatpush.bf16.msra.mxu0 %v475
        %488 = vmatpush.bf16.msra.mxu0 %v474
        %489 = vmatmul.bf16.gmra.mxu0 %v479
        %v490 = vpop.f32.mrf.mxu0
        %v491 = vadd.f32 %v464, %v490
        %v492 = vpop.f32.mrf.mxu0
        %493 = vdwg.mxu0
        %v494 = vxor.u32 %v491, 2147483648
        %v495 = vmul.f32 %v494, 1.442695
        %v496 = vpow.pop %v495
        %v497 = vadd.f32 %v496, 1.0
        %v498 = vrcp.pop %v497
        %v499 = vmul.f32 %v497, %v498
        %v500 = vsub.f32 1.0, %v499
        %v501 = vmul.f32 %v498, %v500
        %v502 = vadd.f32 %v498, %v501
        %vm503 = vweird.f32 %v497
        %vm504 = vweird.f32 %v498
        %vm505 = vmor %vm503, %vm504
        %v506 = vsel %vm505, %v498, %v502
        %v507 = vand.u32 2147483647, %v497
        %vm508 = vcmp.eq.f32.partialorder %v507, 8.507059e+37
        %v509 = vand.u32 %v497, 2147483648
        %v510 = vor.u32 1.1754944e-38, %v509
        %v511 = vsel %vm508, %v510, %v506
        %v512 = vmul.f32 1.0, %v511
        %s513 = scalar_lea.vmem %s333, 16 [#allocation4]
        %514 = vst [vmem:[%s513] sm:$0xff] %v512
        %s515 = scalar_lea.vmem %s0, 12
        %v516 = vld [vmem:[%s515] sm:$0xf]
        %s517 = scalar_lea.vmem %s303, 48 [#allocation2]
        %v518 = vld [vmem:[%s517] sm:$0xf]
        %v519 = vld [vmem:[%s517 + $0x4] sm:$0xf]
        %v520 = vld [vmem:[%s517 + $0x8] sm:$0xf]
        %v521 = vld [vmem:[%s517 + $0xc] sm:$0xf]
        %s522 = scalar_lea.vmem %s310, 3 [#allocation3]
        %v523 = vld [vmem:[%s522] sm:$0x1]
        %v525 = vperm.slane %v523, 0
        %v531 = vunpack.c.l.b16 %v518
        %v532 = vunpack.c.l.b16 %v519
        %v533 = vunpack.c.l.b16 %v520
        %v534 = vunpack.c.l.b16 %v521
        %v535 = vpack.c.b16 %v532, %v531
        %v536 = vpack.c.b16 %v534, %v533
        %v540 = vsel %vm356, %v516, 0
        %542 = vmatpush.bf16.msra.mxu0 0
        %543 = vmatpush.bf16.msra.mxu0 0
        %544 = vmatpush.bf16.msra.mxu0 0
        %545 = vmatpush.bf16.msra.mxu0 0
        %546 = vmatpush.bf16.msra.mxu0 0
        %547 = vmatpush.bf16.msra.mxu0 0
        %548 = vmatpush.bf16.msra.mxu0 %v536
        %549 = vmatpush.bf16.msra.mxu0 %v535
        %550 = vmatmul.bf16.gmra.mxu0 %v540
        %v551 = vpop.f32.mrf.mxu0
        %v552 = vadd.f32 %v525, %v551
        %v553 = vpop.f32.mrf.mxu0
        %554 = vdwg.mxu0
        %v555 = vxor.u32 %v552, 2147483648
        %v556 = vmul.f32 %v555, 1.442695
        %v557 = vpow.pop %v556
        %v558 = vadd.f32 %v557, 1.0
        %v559 = vrcp.pop %v558
        %v560 = vmul.f32 %v558, %v559
        %v561 = vsub.f32 1.0, %v560
        %v562 = vmul.f32 %v559, %v561
        %v563 = vadd.f32 %v559, %v562
        %vm564 = vweird.f32 %v558
        %vm565 = vweird.f32 %v559
        %vm566 = vmor %vm564, %vm565
        %v567 = vsel %vm566, %v559, %v563
        %v568 = vand.u32 2147483647, %v558
        %vm569 = vcmp.eq.f32.partialorder %v568, 8.507059e+37
        %v570 = vand.u32 %v558, 2147483648
        %v571 = vor.u32 1.1754944e-38, %v570
        %v572 = vsel %vm569, %v571, %v567
        %v573 = vmul.f32 1.0, %v572
        %s574 = scalar_lea.vmem %s333, 24 [#allocation4]
        %575 = vst [vmem:[%s574] sm:$0xff] %v573
        %s576 = sand.u32 %s95, 1
        %s577 = sand.u32 %s95, 1
        %s578 = smul.addr %s577, 32
        %s579 = scalar_lea.vmem [#allocation4], %s578
        // Predicated region
        $region108: #{qubite_forward.1} parent=98 // pred_check
          %p580 = pneg %p105
        $region109: #{qubite_forward.1} parent=98 // pred_check_branch
          %582 = sbr.rel (%p580) target = $region111
        $region110: #{qubite_forward.1} parent=98 // pred_region
          %s583 = smul.addr %s14, 8
          %s584 = scalar_lea.vmem %s3, %s583
          // Predicated region
          $region112: #{qubite_forward.1} parent=110 // pred_check
            _
          $region113: #{qubite_forward.1} parent=110 // pred_check_branch
            %586 = sbr.rel (0) target = $region115
          $region114: #{qubite_forward.1} parent=110 // pred_region
            // Predicated region
            $region116: #{qubite_forward.1} parent=114 // pred_check
              _
            $region117: #{qubite_forward.1} parent=114 // pred_check_branch
              %588 = sbr.rel (0) target = $region119
            $region118: #{qubite_forward.1} parent=114 // pred_region
              // Predicated region
              $region131: #{qubite_forward.1} parent=118 // pred_check
                _
              $region132: #{qubite_forward.1} parent=118 // pred_check_branch
                %610 = sbr.rel (0) target = $region134
              $region133: #{qubite_forward.1} parent=118 // pred_region
                loop: start=0, step=1, limit=1
                $region135: #{qubite_forward.1} parent=133 // loop_pre_header
                  _
                $region136: #{qubite_forward.1} parent=133 // loop_header
                  %s612 = sphi 0, %s616
                  %p613 = scmp.ge.s32.totalorder %s612, 1
                  %s617 = sphi %s579, %s579
                  %s618 = sphi %s584, %s584
                $region137: #{qubite_forward.1} parent=133 // loop_header_branch
                  %615 = sbr.rel (%p613) target = $region141
                $region138: #{qubite_forward.1} parent=133 // loop_body
                  %v619 = vld [vmem:[%s617] sm:$0xff]
                  %620 = vst [vmem:[%s618] sm:$0xff] %v619
                  %v621 = vld [vmem:[%s617 + $0x8] sm:$0xff]
                  %622 = vst [vmem:[%s618 + $0x10] sm:$0xff] %v621
                  %v623 = vld [vmem:[%s617 + $0x10] sm:$0xff]
                  %624 = vst [vmem:[%s618 + $0x20] sm:$0xff] %v623
                  %v625 = vld [vmem:[%s617 + $0x18] sm:$0xff]
                  %626 = vst [vmem:[%s618 + $0x30] sm:$0xff] %v625
                $region139: #{qubite_forward.1} parent=133 // loop_footer
                  %s616 = sadd.s32 1, %s612
                $region140: #{qubite_forward.1} parent=133 // loop_footer_branch
                  %611 = sbr.rel target = $region136
                $region141: #{qubite_forward.1} parent=133 // loop_exit
                  _
              $region134: #{qubite_forward.1} parent=118 // pred_fallthru
                _
              // Predicated region
              $region142: #{qubite_forward.1} parent=118 // pred_check
                _
              $region143: #{qubite_forward.1} parent=118 // pred_check_branch
                %628 = sbr.rel target = $region145
              $region144: #{qubite_forward.1} parent=118 // pred_region
                _
              $region145: #{qubite_forward.1} parent=118 // pred_fallthru
                _
            $region119: #{qubite_forward.1} parent=114 // pred_fallthru
              _
            // Predicated region
            $region120: #{qubite_forward.1} parent=114 // pred_check
              _
            $region121: #{qubite_forward.1} parent=114 // pred_check_branch
              %590 = sbr.rel target = $region123
            $region122: #{qubite_forward.1} parent=114 // pred_region
              %s592 = ssub.s32 256, 1
              loop: start=0, step=1, limit=1
              $region124: #{qubite_forward.1} parent=122 // loop_pre_header
                _
              $region125: #{qubite_forward.1} parent=122 // loop_header
                %s594 = sphi 0, %s598
                %p595 = scmp.ge.s32.totalorder %s594, 1
                %s599 = sphi %s579, %s579
                %s600 = sphi %s584, %s584
              $region126: #{qubite_forward.1} parent=122 // loop_header_branch
                %597 = sbr.rel (%p595) target = $region130
              $region127: #{qubite_forward.1} parent=122 // loop_body
                %v601 = vld [vmem:[%s599] sm:%s592]
                %602 = vst [vmem:[%s600] sm:%s592] %v601
                %v603 = vld [vmem:[%s599 + $0x8] sm:%s592]
                %604 = vst [vmem:[%s600 + $0x10] sm:%s592] %v603
                %v605 = vld [vmem:[%s599 + $0x10] sm:%s592]
                %606 = vst [vmem:[%s600 + $0x20] sm:%s592] %v605
                %v607 = vld [vmem:[%s599 + $0x18] sm:%s592]
                %608 = vst [vmem:[%s600 + $0x30] sm:%s592] %v607
              $region128: #{qubite_forward.1} parent=122 // loop_footer
                %s598 = sadd.s32 1, %s594
              $region129: #{qubite_forward.1} parent=122 // loop_footer_branch
                %593 = sbr.rel target = $region125
              $region130: #{qubite_forward.1} parent=122 // loop_exit
                _
            $region123: #{qubite_forward.1} parent=114 // pred_fallthru
              _
          $region115: #{qubite_forward.1} parent=110 // pred_fallthru
            _
          %629 = vnop
        $region111: #{qubite_forward.1} parent=98 // pred_fallthru
          _
      $region99: #{qubite_forward.1} parent=5 // pred_fallthru
        _
      %p630 = scmp.le.s32.totalorder 2, %s9
      // Predicated region
      $region146: #{qubite_forward.1} parent=5 // pred_check
        %p631 = pneg %p630
      $region147: #{qubite_forward.1} parent=5 // pred_check_branch
        %633 = sbr.rel (%p631) target = $region149
      $region148: #{qubite_forward.1} parent=5 // pred_region
        %s634 = ssub.s32 %s9, 2
        // Predicated region
        $region150: #{qubite_forward.1} parent=148 // pred_check
          %p635 = pneg %p111
        $region151: #{qubite_forward.1} parent=148 // pred_check_branch
          %637 = sbr.rel (%p635) target = $region153
        $region152: #{qubite_forward.1} parent=148 // pred_region
          %s638 = sand.u32 %s96, 1
          %s639 = sand.u32 %s96, 1
          %s640 = smul.addr %s639, 32
          %s641 = scalar_lea.vmem [#allocation4], %s640
        $region153: #{qubite_forward.1} parent=148 // pred_fallthru
          _
      $region149: #{qubite_forward.1} parent=5 // pred_fallthru
        _
    $region6: #{qubite_forward.1} parent=1 // loop_footer
      %s13 = sadd.s32 1, %s9
    $region7: #{qubite_forward.1} parent=1 // loop_footer_branch
      %8 = sbr.rel target = $region3
    $region8: #{qubite_forward.1} parent=1 // loop_exit
      _

</llo_original>
